<compile_context>
chip_gen: v7x
topology: tpu7x:2x2x1
jax: 0.10.0
libtpu: 0.0.40
codegen_flags: <defaults>
</compile_context>

<pallas_src>
import math

import jax
import jax.numpy as jnp
from jax.experimental import pallas as pl
from jax.experimental.pallas import tpu as pltpu


def _round_up(x, m):
    return (x + m - 1) // m * m


def _tile_and_pad(dim, tile):
    """(effective_tile, padded_dim): full-dim block for small dims, else pad."""
    if dim <= tile:
        return dim, dim
    return tile, _round_up(dim, tile)


def _lora_linear_kernel(x_ref, wt_ref, b_ref, at_ref, bt_ref, o_ref,
                        acc_ref, xa_ref):
    # x_ref:  (tm, tk)  activation tile
    # wt_ref: (tk, tn)  base weight tile (pre-transposed)
    # b_ref:  (1, tn)   bias tile (f32)
    # at_ref: (tk, r)   lora_A tile (pre-transposed)
    # bt_ref: (r, tn)   lora_B tile (pre-transposed, alpha/r already folded in)
    # o_ref:  (tm, tn)  output tile
    # acc_ref:(tm, tn)  f32 accumulator scratch
    # xa_ref: (tm, r)   f32 LoRA down-projection scratch (persists across j)
    j = pl.program_id(1)
    k = pl.program_id(2)
    nk = pl.num_programs(2)

    @pl.when(k == 0)
    def _():
        acc_ref[...] = jnp.zeros_like(acc_ref)

    @pl.when((j == 0) & (k == 0))
    def _():
        xa_ref[...] = jnp.zeros_like(xa_ref)

    x = x_ref[...]

    # Base path: x @ W.T accumulated on the MXU in f32.
    acc_ref[...] += jnp.dot(x, wt_ref[...], preferred_element_type=jnp.float32)

    # LoRA down-projection is independent of N: compute it only on the first
    # N tile; the scratch persists (same core) and is reused for j > 0.
    @pl.when(j == 0)
    def _():
        xa_ref[...] += jnp.dot(x, at_ref[...],
                               preferred_element_type=jnp.float32)

    @pl.when(k == nk - 1)
    def _():
        y = acc_ref[...] + b_ref[...]
        # LoRA up-projection; alpha/r is already folded into bt.
        y = y + jnp.dot(xa_ref[...].astype(bt_ref.dtype), bt_ref[...],
                        preferred_element_type=jnp.float32)
        o_ref[...] = y.astype(o_ref.dtype)


def prepare_lora_weights(w, b, lora_a, lora_b, alpha, r, *,
                         tn=256, tk=512, compute_dtype=jnp.bfloat16):
    """One-time transform: transpose, fold alpha/r into B, cast, pad to tiles.

    Call once and reuse the returned params for every forward pass so the
    transposes / casts never hit the per-call hot path.
    """
    out_features, in_features = w.shape
    scale = float(alpha) / float(r)

    tk_eff, kp = _tile_and_pad(in_features, tk)
    tn_eff, np_ = _tile_and_pad(out_features, tn)

    wt = jnp.pad(w.T, ((0, kp - in_features), (0, np_ - out_features)))
    at = jnp.pad(lora_a.T, ((0, kp - in_features), (0, 0)))
    bt = jnp.pad((lora_b * scale).T, ((0, 0), (0, np_ - out_features)))
    b2d = jnp.pad(b.reshape(1, -1).astype(jnp.float32),
                  ((0, 0), (0, np_ - out_features)))

    return dict(
        wt=wt.astype(compute_dtype),
        at=at.astype(compute_dtype),
        bt=bt.astype(compute_dtype),
        b=b2d,
        in_features=int(in_features),
        out_features=int(out_features),
        r=int(lora_a.shape[0]),
        tk=tk_eff,
        tn=tn_eff,
    )


def lora_linear(x, params, *, tm=256, vmem_limit_bytes=None):
    """x: (..., in_features) -> (..., out_features)."""
    in_features = params["in_features"]
    out_features = params["out_features"]
    r = params["r"]
    tk, tn = params["tk"], params["tn"]
    wt, at, bt, b2d = params["wt"], params["at"], params["bt"], params["b"]
    kp, np_ = wt.shape

    lead_shape = x.shape[:-1]
    m = int(math.prod(lead_shape)) if lead_shape else 1
    tm_eff, mp = _tile_and_pad(m, tm)

    # TODO(synk): dropout with p > 0 would need pltpu.prng_* masking of x;
    # the reference module is exercised here with p = 0.0 (identity).
    x2d = x.reshape(m, in_features).astype(wt.dtype)
    if mp != m or kp != in_features:
        x2d = jnp.pad(x2d, ((0, mp - m), (0, kp - in_features)))

    grid = (mp // tm_eff, np_ // tn, kp // tk)

    out = pl.pallas_call(
        _lora_linear_kernel,
        out_shape=jax.ShapeDtypeStruct((mp, np_), x.dtype),
        grid=grid,
        in_specs=[
            pl.BlockSpec((tm_eff, tk), lambda i, j, k: (i, k)),   # x
            pl.BlockSpec((tk, tn), lambda i, j, k: (k, j)),       # W.T
            pl.BlockSpec((1, tn), lambda i, j, k: (0, j)),        # bias
            pl.BlockSpec((tk, r), lambda i, j, k: (k, 0)),        # A.T
            pl.BlockSpec((r, tn), lambda i, j, k: (0, j)),        # B.T*scale
        ],
        out_specs=pl.BlockSpec((tm_eff, tn), lambda i, j, k: (i, j)),
        scratch_shapes=[
            pltpu.VMEM((tm_eff, tn), jnp.float32),   # output accumulator
            pltpu.VMEM((tm_eff, r), jnp.float32),    # xa = x @ A.T accumulator
        ],
        compiler_params=pltpu.CompilerParams(
            # K is the reduction axis (output tile revisited) -> arbitrary.
            # N must also stay sequential on one core because the xa scratch
            # filled at j==0 is reused for j>0; M is safe to shard across
            # TensorCores (v7x megacore).
            dimension_semantics=("parallel", "arbitrary", "arbitrary"),
            vmem_limit_bytes=vmem_limit_bytes,
        ),
    )(x2d, wt, b2d, at, bt)

    out = out[:m, :out_features]
    return out.reshape(*lead_shape, out_features)


if __name__ == "__main__":
    # Small shapes consistent with the module.
    batch, seq = 2, 8
    in_features, out_features = 32, 32
    r, alpha = 4, 8

    key = jax.random.PRNGKey(0)
    kx, kw, kb, ka, kbb = jax.random.split(key, 5)

    x = jax.random.normal(kx, (batch, seq, in_features), dtype=jnp.float32)

    # nn.Linear default init: U(-1/sqrt(in), 1/sqrt(in)).
    bound = 1.0 / math.sqrt(in_features)
    w = jax.random.uniform(kw, (out_features, in_features),
                           minval=-bound, maxval=bound, dtype=jnp.float32)
    b = jax.random.uniform(kb, (out_features,),
                           minval=-bound, maxval=bound, dtype=jnp.float32)
    lora_a = jax.random.uniform(ka, (r, in_features),
                                minval=-bound, maxval=bound, dtype=jnp.float32)
    # PyTorch zero-inits lora_B; use small random values so the LoRA path is
    # actually exercised (forward semantics unchanged).
    lora_b = 0.01 * jax.random.normal(kbb, (out_features, r), dtype=jnp.float32)

    # Pure-JAX reference of the PyTorch forward.
    ref = (x @ w.T + b) + (x @ lora_a.T @ lora_b.T) * (alpha / r)

    # 1) f32 compute path: exact-math check.
    params_f32 = prepare_lora_weights(w, b, lora_a, lora_b, alpha, r,
                                      compute_dtype=jnp.float32)
    out_f32 = jax.block_until_ready(lora_linear(x, params_f32))
    assert out_f32.shape == (batch, seq, out_features)
    assert jnp.allclose(out_f32, ref, atol=1e-5, rtol=1e-5), \
        f"f32 max err {jnp.max(jnp.abs(out_f32 - ref))}"

    # 2) Default bf16 MXU path (f32 accumulation): loose check.
    params_bf16 = prepare_lora_weights(w, b, lora_a, lora_b, alpha, r)
    out_bf16 = jax.block_until_ready(lora_linear(x, params_bf16))
    assert jnp.allclose(out_bf16, ref, atol=5e-2, rtol=5e-2), \
        f"bf16 max err {jnp.max(jnp.abs(out_bf16 - ref))}"

    # 3) Multi-tile grid (exercises K/N tiling, accumulator, xa reuse across j).
    in2, out2 = 640, 384
    k2x, k2w, k2b, k2a, k2bb = jax.random.split(jax.random.PRNGKey(1), 5)
    x2 = jax.random.normal(k2x, (batch, seq, in2), dtype=jnp.float32)
    bound2 = 1.0 / math.sqrt(in2)
    w2 = jax.random.uniform(k2w, (out2, in2), minval=-bound2, maxval=bound2,
                            dtype=jnp.float32)
    b2 = jax.random.uniform(k2b, (out2,), minval=-bound2, maxval=bound2,
                            dtype=jnp.float32)
    a2 = jax.random.uniform(k2a, (r, in2), minval=-bound2, maxval=bound2,
                            dtype=jnp.float32)
    bb2 = 0.01 * jax.random.normal(k2bb, (out2, r), dtype=jnp.float32)
    ref2 = (x2 @ w2.T + b2) + (x2 @ a2.T @ bb2.T) * (alpha / r)
    params2 = prepare_lora_weights(w2, b2, a2, bb2, alpha, r,
                                   tn=128, tk=128, compute_dtype=jnp.float32)
    out2v = jax.block_until_ready(lora_linear(x2, params2, tm=8))
    assert out2v.shape == (batch, seq, out2)
    assert jnp.allclose(out2v, ref2, atol=2e-3, rtol=2e-3), \
        f"tiled max err {jnp.max(jnp.abs(out2v - ref2))}"

    print("KERNEL_OK")
</pallas_src>

<mosaic_0001>
module attributes {stable_mosaic.version = 11 : i64} {
  func.func @_lora_linear_kernel(%arg0: i32, %arg1: i32, %arg2: i32, %arg3: memref<16x32xf32, #tpu.memory_space<vmem>>, %arg4: memref<32x32xf32, #tpu.memory_space<vmem>>, %arg5: memref<1x32xf32, #tpu.memory_space<vmem>>, %arg6: memref<32x4xf32, #tpu.memory_space<vmem>>, %arg7: memref<4x32xf32, #tpu.memory_space<vmem>>, %arg8: memref<16x32xf32, #tpu.memory_space<vmem>>, %arg9: memref<16x32xf32, #tpu.memory_space<vmem>>, %arg10: memref<16x4xf32, #tpu.memory_space<vmem>>) attributes {dimension_semantics = [#tpu.dimension_semantics<parallel>, #tpu.dimension_semantics<arbitrary>, #tpu.dimension_semantics<arbitrary>], iteration_bounds = array<i64: 1, 1, 1>, scalar_prefetch = 0 : i64, scratch_operands = 2 : i64, tpu.core_type = #tpu.core_type<tc>, window_params = [{transform_indices = @transform_0, window_bounds = array<i64: 16, 32>}, {transform_indices = @transform_1, window_bounds = array<i64: 32, 32>}, {transform_indices = @transform_2, window_bounds = array<i64: 1, 32>}, {transform_indices = @transform_3, window_bounds = array<i64: 32, 4>}, {transform_indices = @transform_4, window_bounds = array<i64: 4, 32>}, {transform_indices = @transform_5, window_bounds = array<i64: 16, 32>}]} {
    %c0_i32 = arith.constant 0 : i32
    %0 = arith.cmpi eq, %arg2, %c0_i32 : i32
    %1 = arith.extui %0 : i1 to i32
    %c0_i32_0 = arith.constant 0 : i32
    %2 = arith.cmpi ne, %1, %c0_i32_0 : i32
    scf.if %2 {
      %cst_15 = arith.constant 0.000000e+00 : f32
      %20 = vector.broadcast %cst_15 : f32 to vector<16x32xf32>
      %c0_16 = arith.constant 0 : index
      %c0_17 = arith.constant 0 : index
      %21 = vector.load %arg9[%c0_16, %c0_17] : memref<16x32xf32, #tpu.memory_space<vmem>>, vector<16x32xf32>
      tpu.vector_store %arg9[%c0_16, %c0_17], %20 {strides = array<i32>} : memref<16x32xf32, #tpu.memory_space<vmem>>, vector<16x32xf32>,
    } else {
    }
    %c0_i32_1 = arith.constant 0 : i32
    %3 = arith.cmpi eq, %arg1, %c0_i32_1 : i32
    %c0_i32_2 = arith.constant 0 : i32
    %4 = arith.cmpi eq, %arg2, %c0_i32_2 : i32
    %5 = arith.andi %3, %4 : i1
    %6 = arith.extui %5 : i1 to i32
    %c0_i32_3 = arith.constant 0 : i32
    %7 = arith.cmpi ne, %6, %c0_i32_3 : i32
    scf.if %7 {
      %cst_15 = arith.constant 0.000000e+00 : f32
      %20 = vector.broadcast %cst_15 : f32 to vector<16x4xf32>
      %c0_16 = arith.constant 0 : index
      %c0_17 = arith.constant 0 : index
      %21 = vector.load %arg10[%c0_16, %c0_17] : memref<16x4xf32, #tpu.memory_space<vmem>>, vector<16x4xf32>
      tpu.vector_store %arg10[%c0_16, %c0_17], %20 {strides = array<i32>} : memref<16x4xf32, #tpu.memory_space<vmem>>, vector<16x4xf32>,
    } else {
    }
    %c0 = arith.constant 0 : index
    %c0_4 = arith.constant 0 : index
    %8 = vector.load %arg3[%c0, %c0_4] : memref<16x32xf32, #tpu.memory_space<vmem>>, vector<16x32xf32>
    %c0_5 = arith.constant 0 : index
    %c0_6 = arith.constant 0 : index
    %9 = vector.load %arg9[%c0_5, %c0_6] : memref<16x32xf32, #tpu.memory_space<vmem>>, vector<16x32xf32>
    %c0_7 = arith.constant 0 : index
    %c0_8 = arith.constant 0 : index
    %10 = vector.load %arg4[%c0_7, %c0_8] : memref<32x32xf32, #tpu.memory_space<vmem>>, vector<32x32xf32>
    %cst = arith.constant dense<0.000000e+00> : vector<16x32xf32>
    %11 = tpu.matmul %8, %10, %cst {dimension_numbers = #tpu.dot_dimension_numbers<[1], [0], [0], [1], [0, 0, 1, 1], [], []>} : vector<16x32xf32>, vector<32x32xf32>, vector<16x32xf32> -> vector<16x32xf32>
    %12 = arith.addf %9, %11 : vector<16x32xf32>
    %c0_9 = arith.constant 0 : index
    %c0_10 = arith.constant 0 : index
    %13 = vector.load %arg9[%c0_9, %c0_10] : memref<16x32xf32, #tpu.memory_space<vmem>>, vector<16x32xf32>
    tpu.vector_store %arg9[%c0_9, %c0_10], %12 {strides = array<i32>} : memref<16x32xf32, #tpu.memory_space<vmem>>, vector<16x32xf32>,
    %c0_i32_11 = arith.constant 0 : i32
    %14 = arith.cmpi eq, %arg1, %c0_i32_11 : i32
    %15 = arith.extui %14 : i1 to i32
    %c0_i32_12 = arith.constant 0 : i32
    %16 = arith.cmpi ne, %15, %c0_i32_12 : i32
    scf.if %16 {
      %c0_15 = arith.constant 0 : index
      %c0_16 = arith.constant 0 : index
      %20 = vector.load %arg10[%c0_15, %c0_16] : memref<16x4xf32, #tpu.memory_space<vmem>>, vector<16x4xf32>
      %c0_17 = arith.constant 0 : index
      %c0_18 = arith.constant 0 : index
      %21 = vector.load %arg6[%c0_17, %c0_18] : memref<32x4xf32, #tpu.memory_space<vmem>>, vector<32x4xf32>
      %cst_19 = arith.constant dense<0.000000e+00> : vector<16x4xf32>
      %22 = tpu.matmul %8, %21, %cst_19 {dimension_numbers = #tpu.dot_dimension_numbers<[1], [0], [0], [1], [0, 0, 1, 1], [], []>} : vector<16x32xf32>, vector<32x4xf32>, vector<16x4xf32> -> vector<16x4xf32>
      %23 = arith.addf %20, %22 : vector<16x4xf32>
      %c0_20 = arith.constant 0 : index
      %c0_21 = arith.constant 0 : index
      %24 = vector.load %arg10[%c0_20, %c0_21] : memref<16x4xf32, #tpu.memory_space<vmem>>, vector<16x4xf32>
      tpu.vector_store %arg10[%c0_20, %c0_21], %23 {strides = array<i32>} : memref<16x4xf32, #tpu.memory_space<vmem>>, vector<16x4xf32>,
    } else {
    }
    %c0_i32_13 = arith.constant 0 : i32
    %17 = arith.cmpi eq, %arg2, %c0_i32_13 : i32
    %18 = arith.extui %17 : i1 to i32
    %c0_i32_14 = arith.constant 0 : i32
    %19 = arith.cmpi ne, %18, %c0_i32_14 : i32
    scf.if %19 {
      %c0_15 = arith.constant 0 : index
      %c0_16 = arith.constant 0 : index
      %20 = vector.load %arg9[%c0_15, %c0_16] : memref<16x32xf32, #tpu.memory_space<vmem>>, vector<16x32xf32>
      %c0_17 = arith.constant 0 : index
      %c0_18 = arith.constant 0 : index
      %21 = vector.load %arg5[%c0_17, %c0_18] : memref<1x32xf32, #tpu.memory_space<vmem>>, vector<1x32xf32>
      %22 = vector.broadcast %21 : vector<1x32xf32> to vector<16x32xf32>
      %23 = arith.addf %20, %22 : vector<16x32xf32>
      %c0_19 = arith.constant 0 : index
      %c0_20 = arith.constant 0 : index
      %24 = vector.load %arg10[%c0_19, %c0_20] : memref<16x4xf32, #tpu.memory_space<vmem>>, vector<16x4xf32>
      %c0_21 = arith.constant 0 : index
      %c0_22 = arith.constant 0 : index
      %25 = vector.load %arg7[%c0_21, %c0_22] : memref<4x32xf32, #tpu.memory_space<vmem>>, vector<4x32xf32>
      %cst_23 = arith.constant dense<0.000000e+00> : vector<16x32xf32>
      %26 = tpu.matmul %24, %25, %cst_23 {dimension_numbers = #tpu.dot_dimension_numbers<[1], [0], [0], [1], [0, 0, 1, 1], [], []>} : vector<16x4xf32>, vector<4x32xf32>, vector<16x32xf32> -> vector<16x32xf32>
      %27 = arith.addf %23, %26 : vector<16x32xf32>
      %c0_24 = arith.constant 0 : index
      %c0_25 = arith.constant 0 : index
      %28 = vector.load %arg8[%c0_24, %c0_25] : memref<16x32xf32, #tpu.memory_space<vmem>>, vector<16x32xf32>
      tpu.vector_store %arg8[%c0_24, %c0_25], %27 {strides = array<i32>} : memref<16x32xf32, #tpu.memory_space<vmem>>, vector<16x32xf32>,
    } else {
    }
    return
  }
  func.func @transform_0(%arg0: i32, %arg1: i32, %arg2: i32) -> (i32, i32) {
    %c0_i32 = arith.constant 0 : i32
    return %arg0, %arg2 : i32, i32
  }
  func.func @transform_1(%arg0: i32, %arg1: i32, %arg2: i32) -> (i32, i32) {
    %c0_i32 = arith.constant 0 : i32
    return %arg2, %arg1 : i32, i32
  }
  func.func @transform_2(%arg0: i32, %arg1: i32, %arg2: i32) -> (i32, i32) {
    %c0_i32 = arith.constant 0 : i32
    %c0_i32_0 = arith.constant 0 : i32
    return %c0_i32, %arg1 : i32, i32
  }
  func.func @transform_3(%arg0: i32, %arg1: i32, %arg2: i32) -> (i32, i32) {
    %c0_i32 = arith.constant 0 : i32
    %c0_i32_0 = arith.constant 0 : i32
    return %arg2, %c0_i32 : i32, i32
  }
  func.func @transform_4(%arg0: i32, %arg1: i32, %arg2: i32) -> (i32, i32) {
    %c0_i32 = arith.constant 0 : i32
    %c0_i32_0 = arith.constant 0 : i32
    return %c0_i32, %arg1 : i32, i32
  }
  func.func @transform_5(%arg0: i32, %arg1: i32, %arg2: i32) -> (i32, i32) {
    %c0_i32 = arith.constant 0 : i32
    return %arg0, %arg1 : i32, i32
  }
}

</mosaic_0001>

<llo_original>
// kernel: tpu_custom_call.1
$region0: #{tpu_custom_call.1}
  #allocation0 [shape = 'u32[]', space=smem, size = 0x4, offset = 0x4, fixed_abs, tag = 'smem constant byte address 0x4 - core index']
  #allocation1 [shape = 'u32[144,128]{1,0:T(1,128)}', space=vmem, size = 0x12000, scoped, tag = 'internal scratch']
  #allocation2 [shape = 'f32[16,32]{1,0:T(8,128)}', space=vmem, size = 0x2000, scoped, tag = 'scratch operand']
  #allocation3 [shape = 'f32[16,4]{1,0:T(8,128)}', space=vmem, size = 0x2000, scoped, tag = 'scratch operand']
  %s0 = inlined_call_operand.hbm [shape: f32[16,32], index: 0, kind: input, shape index: {}]
  %s1 = inlined_call_operand.vmem [shape: f32[32,32], index: 1, kind: input, shape index: {}]
  %s2 = inlined_call_operand.vmem [shape: f32[1,32], index: 2, kind: input, shape index: {}]
  %s3 = inlined_call_operand.vmem [shape: f32[32,4], index: 3, kind: input, shape index: {}]
  %s4 = inlined_call_operand.vmem [shape: f32[4,32], index: 4, kind: input, shape index: {}]
  %s5 = inlined_call_operand.hbm [shape: f32[16,32], index: 5, kind: output, shape index: {}]
  %s6 = sld [smem:[#allocation0]]
  $region50: #{tpu_custom_call.1} parent=0
    _
  %s8 = ssub.s32 1, %s6
  %s9 = scalar_select 0, %s8, %s6
  $region1: #{tpu_custom_call.1} parent=0
    #allocation4 [shape = 'u8[8192]{0}', space=vmem, size = 0x2000, scoped, tag = 'input window, operand 0, single buffered']
    #allocation5 [shape = 's32[1]{0}', space=sflag, size = 0x4, scoped, tag = 'scoped memory for tpu_custom_call.1']
    #allocation6 [shape = 's32[1]{0}', space=sflag, size = 0x4, scoped, tag = 'scoped memory for tpu_custom_call.1']
    #allocation7 [shape = 'u8[8192]{0}', space=vmem, size = 0x2000, scoped, tag = 'output window, operand 0, single buffered']
    %10 = vsyncpa [#allocation5], 0
    %11 = vsyncpa [#allocation6], 0
    // Predicated region
    $region2: #{tpu_custom_call.1} parent=1 // pred_check
      _
    $region3: #{tpu_custom_call.1} parent=1 // pred_check_branch
      %13 = sbr.rel (0) target = $region5
    $region4: #{tpu_custom_call.1} parent=1 // pred_region
      %s15 = ssub.s32 256, 256
      %16 = vsyncadd [#allocation5], %s15
      %s17 = sshll.u32 [#allocation4], 4
      %s18 = int_to_ptr.vmem [resolvable:$true] %s17
      %23 = dma.hbm_to_vmem [thread:$0]  %s0, 256, %s18, [#allocation5], 128, 128, 8
    $region5: #{tpu_custom_call.1} parent=1 // pred_fallthru
      _
    // Predicated region
    $region6: #{tpu_custom_call.1} parent=1 // pred_check
      _
    $region7: #{tpu_custom_call.1} parent=1 // pred_check_branch
      %25 = sbr.rel (0) target = $region9
    $region8: #{tpu_custom_call.1} parent=1 // pred_region
      _
    $region9: #{tpu_custom_call.1} parent=1 // pred_fallthru
      _
    // Predicated region
    $region10: #{tpu_custom_call.1} parent=1 // pred_check
      _
    $region11: #{tpu_custom_call.1} parent=1 // pred_check_branch
      %27 = sbr.rel (0) target = $region13
    $region12: #{tpu_custom_call.1} parent=1 // pred_region
      _
    $region13: #{tpu_custom_call.1} parent=1 // pred_fallthru
      _
    // Predicated region
    $region14: #{tpu_custom_call.1} parent=1 // pred_check
      _
    $region15: #{tpu_custom_call.1} parent=1 // pred_check_branch
      %29 = sbr.rel (0) target = $region17
    $region16: #{tpu_custom_call.1} parent=1 // pred_region
      _
    $region17: #{tpu_custom_call.1} parent=1 // pred_fallthru
      _
    // Predicated region
    $region18: #{tpu_custom_call.1} parent=1 // pred_check
      _
    $region19: #{tpu_custom_call.1} parent=1 // pred_check_branch
      %31 = sbr.rel (0) target = $region21
    $region20: #{tpu_custom_call.1} parent=1 // pred_region
      _
    $region21: #{tpu_custom_call.1} parent=1 // pred_fallthru
      _
    // Predicated region
    $region22: #{tpu_custom_call.1} parent=1 // pred_check
      _
    $region23: #{tpu_custom_call.1} parent=1 // pred_check_branch
      %33 = sbr.rel (0) target = $region25
    $region24: #{tpu_custom_call.1} parent=1 // pred_region
      %34 = dma.done [#allocation5], 256
    $region25: #{tpu_custom_call.1} parent=1 // pred_fallthru
      _
    %p35 = scmp.eq.s32.totalorder 0, 0
    // Predicated region
    $region26: #{tpu_custom_call.1} parent=1 // pred_check
      %p36 = pneg %p35
    $region27: #{tpu_custom_call.1} parent=1 // pred_check_branch
      %38 = sbr.rel (%p36) target = $region29
    $region28: #{tpu_custom_call.1} parent=1 // pred_region
      %vm39 = vcmask 261120
      %40 = vst.msk [vmem:[#allocation2] sm:$0xff] %vm39, 0.0
      %41 = vst.msk [vmem:[#allocation2 + $0x8] sm:$0xff] %vm39, 0.0
    $region29: #{tpu_custom_call.1} parent=1 // pred_fallthru
      _
    %p42 = scmp.eq.s32.totalorder 0, 0
    %p43 = pnand %p42, %p35
    %p44 = pneg %p43
    // Predicated region
    $region30: #{tpu_custom_call.1} parent=1 // pred_check
      _
    $region31: #{tpu_custom_call.1} parent=1 // pred_check_branch
      %46 = sbr.rel (%p43) target = $region33
    $region32: #{tpu_custom_call.1} parent=1 // pred_region
      %vm47 = vcmask 31744
      %48 = vst.msk [vmem:[#allocation3] sm:$0xff] %vm47, 0.0
      %49 = vst.msk [vmem:[#allocation3 + $0x8] sm:$0xff] %vm47, 0.0
    $region33: #{tpu_custom_call.1} parent=1 // pred_fallthru
      _
    %v50 = vld [vmem:[#allocation4] sm:$0xff]
    %v51 = vld [vmem:[#allocation4 + $0x8] sm:$0xff]
    %v52 = vld [vmem:[#allocation2] sm:$0xff]
    %v53 = vld [vmem:[#allocation2 + $0x8] sm:$0xff]
    %v54 = vld [vmem:[%s1] sm:$0xff]
    %v55 = vld [vmem:[%s1 + $0x8] sm:$0xff]
    %v56 = vld [vmem:[%s1 + $0x10] sm:$0xff]
    %v57 = vld [vmem:[%s1 + $0x18] sm:$0xff]
    %vm58 = vcmask 261120
    %v60 = vsel %vm58, %v50, 0
    %v63 = vsel %vm58, %v51, 0
    %65 = vmatprep.subr.mxu0 0.0
    %66 = vmatpush1.msra.mxu0 %v54
    %67 = vmatprep.subr.mxu0 0.0
    %68 = vmatpush1.msra.mxu0 %v55
    %69 = vmatprep.subr.mxu0 0.0
    %70 = vmatpush1.msra.mxu0 %v56
    %71 = vmatprep.subr.mxu0 0.0
    %72 = vmatpush1.msra.mxu0 %v57
    %73 = vmatprep.subr.mxu0 0.0
    %74 = vmatpush1.msra.mxu0 0.0
    %75 = vmatprep.subr.mxu0 0.0
    %76 = vmatpush1.msra.mxu0 0.0
    %77 = vmatprep.subr.mxu0 0.0
    %78 = vmatpush1.msra.mxu0 0.0
    %79 = vmatprep.subr.mxu0 0.0
    %80 = vmatpush1.msra.mxu0 0.0
    %81 = vmatprep.subr.mxu0 0.0
    %82 = vmatpush1.msra.mxu0 0.0
    %83 = vmatprep.subr.mxu0 0.0
    %84 = vmatpush1.msra.mxu0 0.0
    %85 = vmatprep.subr.mxu0 0.0
    %86 = vmatpush1.msra.mxu0 0.0
    %87 = vmatprep.subr.mxu0 0.0
    %88 = vmatpush1.msra.mxu0 0.0
    %89 = vmatprep.subr.mxu0 0.0
    %90 = vmatpush1.msra.mxu0 0.0
    %91 = vmatprep.subr.mxu0 0.0
    %92 = vmatpush1.msra.mxu0 0.0
    %93 = vmatprep.subr.mxu0 0.0
    %94 = vmatpush1.msra.mxu0 0.0
    %95 = vmatprep.subr.mxu0 0.0
    %96 = vmatpush1.msra.mxu0 0.0
    %97 = vmatprep.subr.mxu0 0.0
    %98 = vmatpush1.msra.mxu0 0.0
    %99 = vmatprep.subr.mxu0 0.0
    %100 = vmatpush1.msra.mxu0 0.0
    %101 = vmatprep.subr.mxu0 0.0
    %102 = vmatpush1.msra.mxu0 0.0
    %103 = vmatprep.subr.mxu0 0.0
    %104 = vmatpush1.msra.mxu0 0.0
    %105 = vmatprep.subr.mxu0 0.0
    %106 = vmatpush1.msra.mxu0 0.0
    %107 = vmatprep.subr.mxu0 0.0
    %108 = vmatpush1.msra.mxu0 0.0
    %109 = vmatprep.subr.mxu0 0.0
    %110 = vmatpush1.msra.mxu0 0.0
    %111 = vmatprep.subr.mxu0 0.0
    %112 = vmatpush1.msra.mxu0 0.0
    %113 = vmatprep.subr.mxu0 0.0
    %114 = vmatpush1.msra.mxu0 0.0
    %115 = vmatprep.subr.mxu0 0.0
    %116 = vmatpush1.msra.mxu0 0.0
    %117 = vmatprep.subr.mxu0 0.0
    %118 = vmatpush1.msra.mxu0 0.0
    %119 = vmatprep.subr.mxu0 0.0
    %120 = vmatpush1.msra.mxu0 0.0
    %121 = vmatprep.subr.mxu0 0.0
    %122 = vmatpush1.msra.mxu0 0.0
    %123 = vmatprep.subr.mxu0 0.0
    %124 = vmatpush1.msra.mxu0 0.0
    %125 = vmatprep.subr.mxu0 0.0
    %126 = vmatpush1.msra.mxu0 0.0
    %127 = vmatprep.subr.mxu0 0.0
    %128 = vmatpush1.msra.mxu0 0.0
    %129 = vmatprep.mubr.f32.mxu0 0.0
    %130 = vmatmul.mubr.f32.gmra.mrb[0].mxu0 %v60
    %v131 = vpop.f32.mrb[0].mxu0
    %v132 = vadd.f32 0.0, %v131
    %v133 = vpop.f32.mrb[0].mxu0
    %134 = vmatprep.mubr.f32.mxu0 0.0
    %135 = vmatmul.mubr.f32.gmra.mrb[0].mxu0 %v63
    %v136 = vpop.f32.mrb[0].mxu0
    %v137 = vadd.f32 0.0, %v136
    %v138 = vpop.f32.mrb[0].mxu0
    %139 = vdwg.mxu0
    %v140 = vadd.f32 %v52, %v132
    %v141 = vadd.f32 %v53, %v137
    %142 = vst.msk [vmem:[#allocation2] sm:$0xff] %vm58, %v140
    %143 = vst.msk [vmem:[#allocation2 + $0x8] sm:$0xff] %vm58, %v141
    // Predicated region
    $region34: #{tpu_custom_call.1} parent=1 // pred_check
      %p144 = pneg %p42
    $region35: #{tpu_custom_call.1} parent=1 // pred_check_branch
      %146 = sbr.rel (%p144) target = $region37
    $region36: #{tpu_custom_call.1} parent=1 // pred_region
      %v147 = vld [vmem:[#allocation3] sm:$0xff]
      %v148 = vld [vmem:[#allocation3 + $0x8] sm:$0xff]
      %v149 = vld [vmem:[%s3] sm:$0xff]
      %v150 = vld [vmem:[%s3 + $0x8] sm:$0xff]
      %v151 = vld [vmem:[%s3 + $0x10] sm:$0xff]
      %v152 = vld [vmem:[%s3 + $0x18] sm:$0xff]
      %153 = vmatprep.subr.mxu0 0.0
      %154 = vmatpush1.msra.mxu0 %v149
      %155 = vmatprep.subr.mxu0 0.0
      %156 = vmatpush1.msra.mxu0 %v150
      %157 = vmatprep.subr.mxu0 0.0
      %158 = vmatpush1.msra.mxu0 %v151
      %159 = vmatprep.subr.mxu0 0.0
      %160 = vmatpush1.msra.mxu0 %v152
      %161 = vmatprep.subr.mxu0 0.0
      %162 = vmatpush1.msra.mxu0 0.0
      %163 = vmatprep.subr.mxu0 0.0
      %164 = vmatpush1.msra.mxu0 0.0
      %165 = vmatprep.subr.mxu0 0.0
      %166 = vmatpush1.msra.mxu0 0.0
      %167 = vmatprep.subr.mxu0 0.0
      %168 = vmatpush1.msra.mxu0 0.0
      %169 = vmatprep.subr.mxu0 0.0
      %170 = vmatpush1.msra.mxu0 0.0
      %171 = vmatprep.subr.mxu0 0.0
      %172 = vmatpush1.msra.mxu0 0.0
      %173 = vmatprep.subr.mxu0 0.0
      %174 = vmatpush1.msra.mxu0 0.0
      %175 = vmatprep.subr.mxu0 0.0
      %176 = vmatpush1.msra.mxu0 0.0
      %177 = vmatprep.subr.mxu0 0.0
      %178 = vmatpush1.msra.mxu0 0.0
      %179 = vmatprep.subr.mxu0 0.0
      %180 = vmatpush1.msra.mxu0 0.0
      %181 = vmatprep.subr.mxu0 0.0
      %182 = vmatpush1.msra.mxu0 0.0
      %183 = vmatprep.subr.mxu0 0.0
      %184 = vmatpush1.msra.mxu0 0.0
      %185 = vmatprep.subr.mxu0 0.0
      %186 = vmatpush1.msra.mxu0 0.0
      %187 = vmatprep.subr.mxu0 0.0
      %188 = vmatpush1.msra.mxu0 0.0
      %189 = vmatprep.subr.mxu0 0.0
      %190 = vmatpush1.msra.mxu0 0.0
      %191 = vmatprep.subr.mxu0 0.0
      %192 = vmatpush1.msra.mxu0 0.0
      %193 = vmatprep.subr.mxu0 0.0
      %194 = vmatpush1.msra.mxu0 0.0
      %195 = vmatprep.subr.mxu0 0.0
      %196 = vmatpush1.msra.mxu0 0.0
      %197 = vmatprep.subr.mxu0 0.0
      %198 = vmatpush1.msra.mxu0 0.0
      %199 = vmatprep.subr.mxu0 0.0
      %200 = vmatpush1.msra.mxu0 0.0
      %201 = vmatprep.subr.mxu0 0.0
      %202 = vmatpush1.msra.mxu0 0.0
      %203 = vmatprep.subr.mxu0 0.0
      %204 = vmatpush1.msra.mxu0 0.0
      %205 = vmatprep.subr.mxu0 0.0
      %206 = vmatpush1.msra.mxu0 0.0
      %207 = vmatprep.subr.mxu0 0.0
      %208 = vmatpush1.msra.mxu0 0.0
      %209 = vmatprep.subr.mxu0 0.0
      %210 = vmatpush1.msra.mxu0 0.0
      %211 = vmatprep.subr.mxu0 0.0
      %212 = vmatpush1.msra.mxu0 0.0
      %213 = vmatprep.subr.mxu0 0.0
      %214 = vmatpush1.msra.mxu0 0.0
      %215 = vmatprep.subr.mxu0 0.0
      %216 = vmatpush1.msra.mxu0 0.0
      %217 = vmatprep.mubr.f32.mxu0 0.0
      %218 = vmatmul.mubr.f32.gmra.mrb[0].mxu0 %v60
      %v219 = vpop.f32.mrb[0].mxu0
      %v220 = vadd.f32 0.0, %v219
      %v221 = vpop.f32.mrb[0].mxu0
      %222 = vmatprep.mubr.f32.mxu0 0.0
      %223 = vmatmul.mubr.f32.gmra.mrb[0].mxu0 %v63
      %v224 = vpop.f32.mrb[0].mxu0
      %v225 = vadd.f32 0.0, %v224
      %v226 = vpop.f32.mrb[0].mxu0
      %227 = vdwg.mxu0
      %v228 = vadd.f32 %v147, %v220
      %v229 = vadd.f32 %v148, %v225
      %vm230 = vcmask 31744
      %231 = vst.msk [vmem:[#allocation3] sm:$0xff] %vm230, %v228
      %232 = vst.msk [vmem:[#allocation3 + $0x8] sm:$0xff] %vm230, %v229
    $region37: #{tpu_custom_call.1} parent=1 // pred_fallthru
      _
    // Predicated region
    $region38: #{tpu_custom_call.1} parent=1 // pred_check
      %p233 = pneg %p35
    $region39: #{tpu_custom_call.1} parent=1 // pred_check_branch
      %235 = sbr.rel (%p233) target = $region41
    $region40: #{tpu_custom_call.1} parent=1 // pred_region
      %v236 = vld [vmem:[#allocation2] sm:$0xff]
      %v237 = vld [vmem:[#allocation2 + $0x8] sm:$0xff]
      %v238 = vld [vmem:[%s2] sm:$0x1]
      %v240 = vlaneseq
      %v241 = vshrl.u32 %v240, 7
      %v242 = vsub.s32 0, %v241
      %v243 = vrot.slane %v238, %v242
      %v245 = vadd.f32 %v236, %v243
      %v246 = vadd.f32 %v237, %v243
      %v247 = vld [vmem:[#allocation3] sm:$0xff]
      %v248 = vld [vmem:[#allocation3 + $0x8] sm:$0xff]
      %v249 = vld [vmem:[%s4] sm:$0xf]
      %vm250 = vcmask 31744
      %v252 = vsel %vm250, %v247, 0
      %v255 = vsel %vm250, %v248, 0
      %vm257 = vcmask 1043456
      %v259 = vsel %vm257, %v249, 0
      %261 = vmatprep.subr.mxu0 0.0
      %262 = vmatpush1.msra.mxu0 %v259
      %263 = vmatprep.subr.mxu0 0.0
      %264 = vmatpush1.msra.mxu0 0.0
      %265 = vmatprep.subr.mxu0 0.0
      %266 = vmatpush1.msra.mxu0 0.0
      %267 = vmatprep.subr.mxu0 0.0
      %268 = vmatpush1.msra.mxu0 0.0
      %269 = vmatprep.subr.mxu0 0.0
      %270 = vmatpush1.msra.mxu0 0.0
      %271 = vmatprep.subr.mxu0 0.0
      %272 = vmatpush1.msra.mxu0 0.0
      %273 = vmatprep.subr.mxu0 0.0
      %274 = vmatpush1.msra.mxu0 0.0
      %275 = vmatprep.subr.mxu0 0.0
      %276 = vmatpush1.msra.mxu0 0.0
      %277 = vmatprep.subr.mxu0 0.0
      %278 = vmatpush1.msra.mxu0 0.0
      %279 = vmatprep.subr.mxu0 0.0
      %280 = vmatpush1.msra.mxu0 0.0
      %281 = vmatprep.subr.mxu0 0.0
      %282 = vmatpush1.msra.mxu0 0.0
      %283 = vmatprep.subr.mxu0 0.0
      %284 = vmatpush1.msra.mxu0 0.0
      %285 = vmatprep.subr.mxu0 0.0
      %286 = vmatpush1.msra.mxu0 0.0
      %287 = vmatprep.subr.mxu0 0.0
      %288 = vmatpush1.msra.mxu0 0.0
      %289 = vmatprep.subr.mxu0 0.0
      %290 = vmatpush1.msra.mxu0 0.0
      %291 = vmatprep.subr.mxu0 0.0
      %292 = vmatpush1.msra.mxu0 0.0
      %293 = vmatprep.subr.mxu0 0.0
      %294 = vmatpush1.msra.mxu0 0.0
      %295 = vmatprep.subr.mxu0 0.0
      %296 = vmatpush1.msra.mxu0 0.0
      %297 = vmatprep.subr.mxu0 0.0
      %298 = vmatpush1.msra.mxu0 0.0
      %299 = vmatprep.subr.mxu0 0.0
      %300 = vmatpush1.msra.mxu0 0.0
      %301 = vmatprep.subr.mxu0 0.0
      %302 = vmatpush1.msra.mxu0 0.0
      %303 = vmatprep.subr.mxu0 0.0
      %304 = vmatpush1.msra.mxu0 0.0
      %305 = vmatprep.subr.mxu0 0.0
      %306 = vmatpush1.msra.mxu0 0.0
      %307 = vmatprep.subr.mxu0 0.0
      %308 = vmatpush1.msra.mxu0 0.0
      %309 = vmatprep.subr.mxu0 0.0
      %310 = vmatpush1.msra.mxu0 0.0
      %311 = vmatprep.subr.mxu0 0.0
      %312 = vmatpush1.msra.mxu0 0.0
      %313 = vmatprep.subr.mxu0 0.0
      %314 = vmatpush1.msra.mxu0 0.0
      %315 = vmatprep.subr.mxu0 0.0
      %316 = vmatpush1.msra.mxu0 0.0
      %317 = vmatprep.subr.mxu0 0.0
      %318 = vmatpush1.msra.mxu0 0.0
      %319 = vmatprep.subr.mxu0 0.0
      %320 = vmatpush1.msra.mxu0 0.0
      %321 = vmatprep.subr.mxu0 0.0
      %322 = vmatpush1.msra.mxu0 0.0
      %323 = vmatprep.subr.mxu0 0.0
      %324 = vmatpush1.msra.mxu0 0.0
      %325 = vmatprep.mubr.f32.mxu0 0.0
      %326 = vmatmul.mubr.f32.gmra.mrb[0].mxu0 %v252
      %v327 = vpop.f32.mrb[0].mxu0
      %v328 = vadd.f32 0.0, %v327
      %v329 = vpop.f32.mrb[0].mxu0
      %330 = vmatprep.mubr.f32.mxu0 0.0
      %331 = vmatmul.mubr.f32.gmra.mrb[0].mxu0 %v255
      %v332 = vpop.f32.mrb[0].mxu0
      %v333 = vadd.f32 0.0, %v332
      %v334 = vpop.f32.mrb[0].mxu0
      %335 = vdwg.mxu0
      %v336 = vadd.f32 %v245, %v328
      %v337 = vadd.f32 %v246, %v333
      %338 = vst.msk [vmem:[#allocation7] sm:$0xff] %vm58, %v336
      %339 = vst.msk [vmem:[#allocation7 + $0x8] sm:$0xff] %vm58, %v337
    $region41: #{tpu_custom_call.1} parent=1 // pred_fallthru
      _
    // Predicated region
    $region42: #{tpu_custom_call.1} parent=1 // pred_check
      _
    $region43: #{tpu_custom_call.1} parent=1 // pred_check_branch
      %341 = sbr.rel (0) target = $region45
    $region44: #{tpu_custom_call.1} parent=1 // pred_region
      %s343 = ssub.s32 256, 256
      %344 = vsyncadd [#allocation6], %s343
      %s345 = sshll.u32 [#allocation7], 4
      %s346 = int_to_ptr.vmem [resolvable:$true] %s345
      %351 = dma.vmem_to_hbm [thread:$0]  %s346, 256, %s5, [#allocation6], 128, 128, 8
    $region45: #{tpu_custom_call.1} parent=1 // pred_fallthru
      _
    // Predicated region
    $region46: #{tpu_custom_call.1} parent=1 // pred_check
      _
    $region47: #{tpu_custom_call.1} parent=1 // pred_check_branch
      %353 = sbr.rel (0) target = $region49
    $region48: #{tpu_custom_call.1} parent=1 // pred_region
      %354 = dma.done [#allocation6], 256
    $region49: #{tpu_custom_call.1} parent=1 // pred_fallthru
      _
    %355 = vsyncpa [#allocation5], 1
    %356 = vsyncpa [#allocation6], 1

</llo_original>
